<compile_context>
chip_gen: v7x
topology: tpu7x:2x2x1
jax: 0.10.0
libtpu: 0.0.40
codegen_flags: <defaults>
</compile_context>

<pallas_src>
import jax
import jax.numpy as jnp
from jax.experimental import pallas as pl
from jax.experimental.pallas import tpu as pltpu


def _chomp_copy_kernel(x_ref, o_ref):
    # x_ref: (TR, L_in_block); o_ref: (TR, L_out).
    # If the BlockSpec already chomped the input (L_in_block == L_out) the
    # slice below is a no-op; otherwise it is a static slice of the leading
    # L_out lanes (pure vld/vst copy, no compute).
    o_ref[...] = x_ref[:, : o_ref.shape[-1]]


def chomp1d(x, chomp_size):
    """Pallas equivalent of Chomp1d(chomp_size)(x) for x of shape (N, C, L)."""
    N, C, L = x.shape
    assert 0 < chomp_size < L, "need 0 < chomp_size < L"
    L_out = L - chomp_size

    # Flatten batch x channel into one row axis (free reshape: leading dims).
    R = N * C
    x2 = x.reshape(R, L)

    itemsize = x.dtype.itemsize

    # "Lean" path: skip DMAing the chomped tail when the input block stays
    # 128-lane aligned (BlockSpec last-dim rule). Otherwise load full L rows.
    lean = (L_out % 128) == 0
    lanes_in = L_out if lean else L

    # Row tile: as large as fits a conservative VMEM budget. With input+output
    # double-buffered this stays ~<= 12 MiB, under every chip's scoped default
    # (16 MiB v5e, 32 MiB v6e/v7x), keeping 2-deep pipelining intact.
    budget_bytes = 6 * 1024 * 1024
    bytes_per_row = (lanes_in + L_out) * itemsize
    rows_fit = max(1, budget_bytes // bytes_per_row)
    if R <= rows_fit:
        TR = R                                   # full row extent (always legal)
    else:
        TR = max(32, (rows_fit // 32) * 32)      # multiple of 32 sublanes (any dtype)

    grid = (pl.cdiv(R, TR),)

    in_spec = pl.BlockSpec((TR, lanes_in), lambda r: (r, 0))
    out_spec = pl.BlockSpec((TR, L_out), lambda r: (r, 0))

    y2 = pl.pallas_call(
        _chomp_copy_kernel,
        out_shape=jax.ShapeDtypeStruct((R, L_out), x.dtype),
        grid=grid,
        in_specs=[in_spec],
        out_specs=out_spec,
        compiler_params=pltpu.CompilerParams(dimension_semantics=("parallel",)),
    )(x2)

    return y2.reshape(N, C, L_out)


if __name__ == "__main__":
    key0, key1 = jax.random.split(jax.random.PRNGKey(0), 2)

    # Small shapes consistent with the module's forward: (batch, channels, seq).
    N, C, L, chomp_size = 2, 4, 16, 3
    x = jax.random.normal(key0, (N, C, L), dtype=jnp.float32)

    y = chomp1d(x, chomp_size)
    jax.block_until_ready(y)

    ref = x[:, :, :-chomp_size]
    assert y.shape == (N, C, L - chomp_size), y.shape
    assert jnp.array_equal(y, ref), "mismatch vs reference slice (ragged path)"

    # Also exercise the lane-aligned lean-DMA path (L_out % 128 == 0).
    x_a = jax.random.normal(key1, (2, 4, 131), dtype=jnp.float32)
    y_a = chomp1d(x_a, 3)
    jax.block_until_ready(y_a)
    assert jnp.array_equal(y_a, x_a[:, :, :-3]), "mismatch vs reference (lean path)"

    print("KERNEL_OK")
</pallas_src>

<mosaic_0001>
module attributes {stable_mosaic.version = 11 : i64} {
  func.func @_chomp_copy_kernel(%arg0: i32, %arg1: memref<8x16xf32, #tpu.memory_space<vmem>>, %arg2: memref<8x13xf32, #tpu.memory_space<vmem>>) attributes {dimension_semantics = [#tpu.dimension_semantics<parallel>], iteration_bounds = array<i64: 1>, scalar_prefetch = 0 : i64, scratch_operands = 0 : i64, tpu.core_type = #tpu.core_type<tc>, window_params = [{transform_indices = @transform_0, window_bounds = array<i64: 8, 16>}, {transform_indices = @transform_1, window_bounds = array<i64: 8, 13>}]} {
    %c0 = arith.constant 0 : index
    %c0_0 = arith.constant 0 : index
    %0 = vector.load %arg1[%c0, %c0_0] : memref<8x16xf32, #tpu.memory_space<vmem>>, vector<8x13xf32>
    %c0_1 = arith.constant 0 : index
    %c0_2 = arith.constant 0 : index
    %1 = vector.load %arg2[%c0_1, %c0_2] : memref<8x13xf32, #tpu.memory_space<vmem>>, vector<8x13xf32>
    tpu.vector_store %arg2[%c0_1, %c0_2], %0 {strides = array<i32>} : memref<8x13xf32, #tpu.memory_space<vmem>>, vector<8x13xf32>,
    return
  }
  func.func @transform_0(%arg0: i32) -> (i32, i32) {
    %c0_i32 = arith.constant 0 : i32
    %c0_i32_0 = arith.constant 0 : i32
    return %arg0, %c0_i32 : i32, i32
  }
  func.func @transform_1(%arg0: i32) -> (i32, i32) {
    %c0_i32 = arith.constant 0 : i32
    %c0_i32_0 = arith.constant 0 : i32
    return %arg0, %c0_i32 : i32, i32
  }
}

</mosaic_0001>

<llo_original>
// kernel: tpu_custom_call.1
$region0: #{tpu_custom_call.1}
  #allocation0 [shape = 'u32[]', space=smem, size = 0x4, offset = 0x4, fixed_abs, tag = 'smem constant byte address 0x4 - core index']
  #allocation1 [shape = 'u32[144,128]{1,0:T(1,128)}', space=vmem, size = 0x12000, scoped, tag = 'internal scratch']
  %s0 = inlined_call_operand.hbm [shape: f32[8,16], index: 0, kind: input, shape index: {}]
  %s1 = inlined_call_operand.hbm [shape: f32[8,13], index: 1, kind: output, shape index: {}]
  %s2 = sld [smem:[#allocation0]]
  $region18: #{tpu_custom_call.1} parent=0
    _
  %s4 = ssub.s32 1, %s2
  %s5 = scalar_select 0, %s4, %s2
  $region1: #{tpu_custom_call.1} parent=0
    #allocation2 [shape = 'u8[4096]{0}', space=vmem, size = 0x1000, scoped, tag = 'input window, operand 0, single buffered']
    #allocation3 [shape = 's32[1]{0}', space=sflag, size = 0x4, scoped, tag = 'scoped memory for tpu_custom_call.1']
    #allocation4 [shape = 's32[1]{0}', space=sflag, size = 0x4, scoped, tag = 'scoped memory for tpu_custom_call.1']
    #allocation5 [shape = 'u8[4096]{0}', space=vmem, size = 0x1000, scoped, tag = 'output window, operand 0, single buffered']
    %6 = vsyncpa [#allocation3], 0
    %7 = vsyncpa [#allocation4], 0
    // Predicated region
    $region2: #{tpu_custom_call.1} parent=1 // pred_check
      _
    $region3: #{tpu_custom_call.1} parent=1 // pred_check_branch
      %9 = sbr.rel (0) target = $region5
    $region4: #{tpu_custom_call.1} parent=1 // pred_region
      %s11 = ssub.s32 128, 128
      %12 = vsyncadd [#allocation3], %s11
      %s14 = sshll.u32 [#allocation2], 4
      %s15 = int_to_ptr.vmem [resolvable:$true] %s14
      %17 = dma.hbm_to_vmem [thread:$0]  %s0, 128, %s15, [#allocation3]
    $region5: #{tpu_custom_call.1} parent=1 // pred_fallthru
      _
    // Predicated region
    $region6: #{tpu_custom_call.1} parent=1 // pred_check
      _
    $region7: #{tpu_custom_call.1} parent=1 // pred_check_branch
      %19 = sbr.rel (0) target = $region9
    $region8: #{tpu_custom_call.1} parent=1 // pred_region
      %20 = dma.done [#allocation3], 128
    $region9: #{tpu_custom_call.1} parent=1 // pred_fallthru
      _
    %v21 = vld [vmem:[#allocation2] sm:$0xff]
    %vm22 = vcmask 105472
    %23 = vst.msk [vmem:[#allocation5] sm:$0xff] %vm22, %v21
    // Predicated region
    $region10: #{tpu_custom_call.1} parent=1 // pred_check
      _
    $region11: #{tpu_custom_call.1} parent=1 // pred_check_branch
      %25 = sbr.rel (0) target = $region13
    $region12: #{tpu_custom_call.1} parent=1 // pred_region
      %s27 = ssub.s32 128, 128
      %28 = vsyncadd [#allocation4], %s27
      %s30 = sshll.u32 [#allocation5], 4
      %s31 = int_to_ptr.vmem [resolvable:$true] %s30
      %33 = dma.vmem_to_hbm [thread:$0]  %s31, 128, %s1, [#allocation4]
    $region13: #{tpu_custom_call.1} parent=1 // pred_fallthru
      _
    // Predicated region
    $region14: #{tpu_custom_call.1} parent=1 // pred_check
      _
    $region15: #{tpu_custom_call.1} parent=1 // pred_check_branch
      %35 = sbr.rel (0) target = $region17
    $region16: #{tpu_custom_call.1} parent=1 // pred_region
      %36 = dma.done [#allocation4], 128
    $region17: #{tpu_custom_call.1} parent=1 // pred_fallthru
      _
    %37 = vsyncpa [#allocation3], 1
    %38 = vsyncpa [#allocation4], 1

</llo_original>
